<compile_context>
chip_gen: v7x
topology: tpu7x:2x2x1
jax: 0.10.0
libtpu: 0.0.40
codegen_flags: <defaults>
</compile_context>

<pallas_src>
import math

import jax
import jax.numpy as jnp
from jax.experimental import pallas as pl
from jax.experimental.pallas import tpu as pltpu


_TARGET_TILE_BYTES = 4 << 20  # ~1-4 MiB per d block amortises the ~0.35us step cost


def rev2fwd_kernel(d_ref, g_ref, o_ref, acc_ref):
    # d_ref: (tn, M, tk) block, g_ref: (tn, 1, tk) block,
    # o_ref: (1, M, 1) f32 partial output, acc_ref: (M, tk) f32 scratch.
    n = pl.program_id(1)
    k = pl.program_id(2)

    @pl.when(jnp.logical_and(n == 0, k == 0))
    def _():
        acc_ref[...] = jnp.zeros_like(acc_ref)

    # Native-dtype VPU multiply (Mosaic widens on v5e which has no bf16 VALU),
    # widened to f32 at the accumulate. The leading (tn) axis reduction is
    # plain vreg adds (VPU only, no XLU).
    prod = (d_ref[...] * g_ref[...]).astype(jnp.float32)      # (tn, M, tk)
    acc_ref[...] = acc_ref[...] + jnp.sum(prod, axis=0)       # (M, tk)

    @pl.when(jnp.logical_and(n == pl.num_programs(1) - 1,
                             k == pl.num_programs(2) - 1))
    def _():
        # Single cross-lane (XLU) reduction per output block, epilogue only.
        o_ref[0] = jnp.sum(acc_ref[...], axis=-1, keepdims=True)


def _tpu_info_attr(names, default):
    try:
        info = pltpu.get_tpu_info()
    except Exception:
        return default
    for name in names:
        v = getattr(info, name, None)
        if isinstance(v, int) and v > 0:
            return v
    return default


def _vmem_budget():
    """(working-set budget, vmem_limit_bytes) per chip generation."""
    cap = _tpu_info_attr(("vmem_capacity_bytes",), 64 << 20)  # worst case: v7x
    ws_budget = max(16 << 20, cap // 2 - (8 << 20))   # ~24 MiB v7x, ~56 MiB v5e/v6e
    vmem_limit = min(cap - (8 << 20), cap // 2 + (16 << 20))  # ~48 MiB v7x, ~80 MiB others
    return ws_budget, vmem_limit


def _num_tensorcores():
    n = _tpu_info_attr(
        ("num_cores", "num_tensorcores", "tensor_core_count",
         "core_count", "num_cores_per_chip"),
        1,
    )
    return max(1, min(int(n), 2))   # only v7x has 2 TCs per chip today


def _choose_tiles(nb, M, K, itemsize, ws_budget):
    """Pick (tn, tk) for one (nb, M, K) batch region.

    Prefer tk == K (one fully contiguous HBM run per block) and tile the batch
    axis (tn) so each step moves ~a few MiB; only tile K when a single
    (1, M, K) block would blow the per-step VMEM budget.
    """
    ceiling = max(ws_budget // 4, 1 << 20)   # cap on a single d tile
    row_bytes = M * K * itemsize
    if row_bytes <= ceiling or K % 128 != 0:
        # Full lane extent (contiguous DMA). Block the batch axis.
        tn = max(1, min(nb,
                        max(1, _TARGET_TILE_BYTES // row_bytes),
                        max(1, ceiling // row_bytes)))
        while nb % tn:                     # tn must divide the per-core batch extent
            tn -= 1
        return tn, K
    # Tile K (128-aligned); caller strips any non-aligned K remainder first.
    tk = max(128, (ceiling // (M * itemsize)) // 128 * 128)
    tk = min(tk, K)
    while K % tk:
        tk -= 128
    return 1, tk


def _rev2fwd_region_f32(d, g, n_cores, ws_budget, vmem_limit):
    """Contraction over one contiguous K region. Returns f32 (M,)."""
    N, M, K = d.shape
    itemsize = jnp.dtype(d.dtype).itemsize

    # Split the batch across TensorCores only when the chip actually has >1.
    n_split = n_cores if (n_cores > 1 and N % n_cores == 0) else 1
    nb = N // n_split
    tn, tk = _choose_tiles(nb, M, K, itemsize, ws_budget)
    nbb = nb // tn            # batch blocks per core
    kt = K // tk              # K blocks (1 when tk == K)

    d_spec_kwargs = {}
    if kt > 1:
        # Strided per-step DMA (M sub-runs of tk bytes) -> deepen pipelining.
        d_spec_kwargs = dict(pipeline_mode=pl.Buffered(3))

    in_specs = [
        pl.BlockSpec((tn, M, tk), lambda c, n, k: (c * nbb + n, 0, k),
                     **d_spec_kwargs),
        pl.BlockSpec((tn, 1, tk), lambda c, n, k: (c * nbb + n, 0, k)),
    ]
    out_spec = pl.BlockSpec((1, M, 1), lambda c, n, k: (c, 0, 0))

    cost = pl.CostEstimate(
        flops=2 * N * M * K,
        transcendentals=0,
        bytes_accessed=(N * M * K + N * K) * itemsize + n_split * M * 4,
    )

    def build(dim_sems):
        return pl.pallas_call(
            rev2fwd_kernel,
            out_shape=jax.ShapeDtypeStruct((n_split, M, 1), jnp.float32),
            grid_spec=pltpu.PrefetchScalarGridSpec(
                num_scalar_prefetch=0,
                grid=(n_split, nbb, kt),            # reduction axes last
                in_specs=in_specs,
                out_specs=out_spec,
                scratch_shapes=[pltpu.VMEM((M, tk), jnp.float32)],
            ),
            compiler_params=pltpu.CompilerParams(
                dimension_semantics=dim_sems,
                vmem_limit_bytes=vmem_limit,
            ),
            cost_estimate=cost,
        )

    # Leading axis: CORE_PARALLEL is what reliably shards across the 2 TCs on
    # v7x; fall back to "parallel"/"arbitrary" if this jax/Mosaic rejects it.
    candidates = []
    if n_split > 1:
        candidates.append((pltpu.CORE_PARALLEL, pltpu.ARBITRARY, pltpu.ARBITRARY))
        candidates.append(("parallel", "arbitrary", "arbitrary"))
    candidates.append(("arbitrary", "arbitrary", "arbitrary"))

    partials = None
    last_err = None
    for sems in candidates:
        try:
            partials = jax.block_until_ready(build(sems)(d, g))
            break
        except Exception as e:   # hardware / jax-version dependent
            last_err = e
            partials = None
    if partials is None:
        raise last_err

    # Tiny (n_split, M) partial-sum done in f32 in the wrapper.
    return jnp.sum(partials, axis=0).reshape(M)


def rev2fwd(x, input_d):
    """x: (N, C, H, W); input_d: (N*M, C, H, W). Returns (M,)."""
    N = x.shape[0]
    K = int(math.prod(x.shape[1:]))
    NM = input_d.shape[0]
    assert NM % N == 0, "input_d leading dim must be a multiple of batch size"
    M = NM // N

    # Free reshapes only -- K (=C*H*W) stays on the lane axis, no transpose.
    d = input_d.reshape(N, M, K)   # (N, M, K)
    g = x.reshape(N, 1, K)         # (N, 1, K)

    ws_budget, vmem_limit = _vmem_budget()
    n_cores = _num_tensorcores()

    itemsize = jnp.dtype(d.dtype).itemsize
    ceiling = max(ws_budget // 4, 1 << 20)
    if M * K * itemsize > ceiling and K % 128 != 0 and K > 128:
        # Huge, non-128-aligned K: 128-aligned main region + small remainder
        # (rare corner; the lane slices may materialise a copy, but the path
        # stays within VMEM budgets instead of failing compilation).
        k_main = (K // 128) * 128
        out = (_rev2fwd_region_f32(d[:, :, :k_main], g[:, :, :k_main],
                                   n_cores, ws_budget, vmem_limit)
               + _rev2fwd_region_f32(d[:, :, k_main:], g[:, :, k_main:],
                                     n_cores, ws_budget, vmem_limit))
    else:
        out = _rev2fwd_region_f32(d, g, n_cores, ws_budget, vmem_limit)

    return out.astype(jnp.result_type(x.dtype, input_d.dtype))


if __name__ == "__main__":
    # Small shapes consistent with the forward: batch N=2, M=8 stored
    # derivative directions (true batch N*M=16), C=4, H=W=16.
    N, M, C, H, W = 2, 8, 4, 16, 16
    key = jax.random.PRNGKey(0)
    k1, k2 = jax.random.split(key)
    x = jax.random.normal(k1, (N, C, H, W), dtype=jnp.float32)            # grad_output
    input_d = jax.random.normal(k2, (N * M, C, H, W), dtype=jnp.float32)  # stored input_d

    out = rev2fwd(x, input_d)
    out = jax.block_until_ready(out)

    # Reference (pure JAX) for sanity.
    ref = jnp.einsum("nmchw,nchw->m", input_d.reshape(N, M, C, H, W), x)
    assert out.shape == (M,)
    assert jnp.allclose(out, ref, atol=1e-3, rtol=1e-3)

    print("KERNEL_OK")
</pallas_src>

<mosaic_0001>
module attributes {stable_mosaic.version = 11 : i64} {
  func.func @rev2fwd_kernel(%arg0: i32, %arg1: i32, %arg2: i32, %arg3: memref<2x8x1024xf32, #tpu.memory_space<vmem>>, %arg4: memref<2x1x1024xf32, #tpu.memory_space<vmem>>, %arg5: memref<1x8x1xf32, #tpu.memory_space<vmem>>, %arg6: memref<8x1024xf32, #tpu.memory_space<vmem>>) attributes {dimension_semantics = [#tpu.dimension_semantics<arbitrary>, #tpu.dimension_semantics<arbitrary>, #tpu.dimension_semantics<arbitrary>], iteration_bounds = array<i64: 1, 1, 1>, scalar_prefetch = 0 : i64, scratch_operands = 1 : i64, tpu.core_type = #tpu.core_type<tc>, window_params = [{transform_indices = @transform_0, window_bounds = array<i64: 2, 8, 1024>}, {transform_indices = @transform_1, window_bounds = array<i64: 2, 1, 1024>}, {transform_indices = @transform_2, window_bounds = array<i64: 1, 8, 1>}]} {
    %c0_i32 = arith.constant 0 : i32
    %0 = arith.cmpi eq, %arg1, %c0_i32 : i32
    %c0_i32_0 = arith.constant 0 : i32
    %1 = arith.cmpi eq, %arg2, %c0_i32_0 : i32
    %2 = arith.andi %0, %1 : i1
    %3 = arith.extui %2 : i1 to i32
    %c0_i32_1 = arith.constant 0 : i32
    %4 = arith.cmpi ne, %3, %c0_i32_1 : i32
    scf.if %4 {
      %cst_14 = arith.constant 0.000000e+00 : f32
      %18 = vector.broadcast %cst_14 : f32 to vector<8x1024xf32>
      %c0_15 = arith.constant 0 : index
      %c0_16 = arith.constant 0 : index
      %19 = vector.load %arg6[%c0_15, %c0_16] : memref<8x1024xf32, #tpu.memory_space<vmem>>, vector<8x1024xf32>
      tpu.vector_store %arg6[%c0_15, %c0_16], %18 {strides = array<i32>} : memref<8x1024xf32, #tpu.memory_space<vmem>>, vector<8x1024xf32>,
    } else {
    }
    %c0 = arith.constant 0 : index
    %c0_2 = arith.constant 0 : index
    %c0_3 = arith.constant 0 : index
    %5 = vector.load %arg3[%c0, %c0_2, %c0_3] : memref<2x8x1024xf32, #tpu.memory_space<vmem>>, vector<2x8x1024xf32>
    %c0_4 = arith.constant 0 : index
    %c0_5 = arith.constant 0 : index
    %c0_6 = arith.constant 0 : index
    %6 = vector.load %arg4[%c0_4, %c0_5, %c0_6] : memref<2x1x1024xf32, #tpu.memory_space<vmem>>, vector<2x1x1024xf32>
    %7 = vector.broadcast %6 : vector<2x1x1024xf32> to vector<2x8x1024xf32>
    %8 = arith.mulf %5, %7 : vector<2x8x1024xf32>
    %c0_7 = arith.constant 0 : index
    %c0_8 = arith.constant 0 : index
    %9 = vector.load %arg6[%c0_7, %c0_8] : memref<8x1024xf32, #tpu.memory_space<vmem>>, vector<8x1024xf32>
    %cst = arith.constant dense<0.000000e+00> : vector<8x1024xf32>
    %10 = vector.multi_reduction <add>, %8, %cst [0] : vector<2x8x1024xf32> to vector<8x1024xf32>
    %11 = arith.addf %9, %10 : vector<8x1024xf32>
    %c0_9 = arith.constant 0 : index
    %c0_10 = arith.constant 0 : index
    %12 = vector.load %arg6[%c0_9, %c0_10] : memref<8x1024xf32, #tpu.memory_space<vmem>>, vector<8x1024xf32>
    tpu.vector_store %arg6[%c0_9, %c0_10], %11 {strides = array<i32>} : memref<8x1024xf32, #tpu.memory_space<vmem>>, vector<8x1024xf32>,
    %c0_i32_11 = arith.constant 0 : i32
    %13 = arith.cmpi eq, %arg1, %c0_i32_11 : i32
    %c0_i32_12 = arith.constant 0 : i32
    %14 = arith.cmpi eq, %arg2, %c0_i32_12 : i32
    %15 = arith.andi %13, %14 : i1
    %16 = arith.extui %15 : i1 to i32
    %c0_i32_13 = arith.constant 0 : i32
    %17 = arith.cmpi ne, %16, %c0_i32_13 : i32
    scf.if %17 {
      %c0_14 = arith.constant 0 : index
      %c0_15 = arith.constant 0 : index
      %18 = vector.load %arg6[%c0_14, %c0_15] : memref<8x1024xf32, #tpu.memory_space<vmem>>, vector<8x1024xf32>
      %cst_16 = arith.constant dense<0.000000e+00> : vector<8xf32>
      %19 = vector.multi_reduction <add>, %18, %cst_16 [1] : vector<8x1024xf32> to vector<8xf32>
      %20 = vector.shape_cast %19 : vector<8xf32> to vector<8x1xf32>
      %c0_17 = arith.constant 0 : index
      %c0_18 = arith.constant 0 : index
      %c0_19 = arith.constant 0 : index
      %21 = vector.load %arg5[%c0_17, %c0_18, %c0_19] : memref<1x8x1xf32, #tpu.memory_space<vmem>>, vector<1x8x1xf32>
      %22 = vector.shape_cast %21 : vector<1x8x1xf32> to vector<8x1xf32>
      %23 = vector.shape_cast %20 : vector<8x1xf32> to vector<1x8x1xf32>
      tpu.vector_store %arg5[%c0_17, %c0_18, %c0_19], %23 {strides = array<i32>} : memref<1x8x1xf32, #tpu.memory_space<vmem>>, vector<1x8x1xf32>,
    } else {
    }
    return
  }
  func.func @transform_0(%arg0: i32, %arg1: i32, %arg2: i32) -> (i32, i32, i32) {
    %c1_i32 = arith.constant 1 : i32
    %0 = arith.muli %arg0, %c1_i32 : i32
    %1 = arith.addi %0, %arg1 : i32
    %c0_i32 = arith.constant 0 : i32
    %c0_i32_0 = arith.constant 0 : i32
    return %1, %c0_i32, %arg2 : i32, i32, i32
  }
  func.func @transform_1(%arg0: i32, %arg1: i32, %arg2: i32) -> (i32, i32, i32) {
    %c1_i32 = arith.constant 1 : i32
    %0 = arith.muli %arg0, %c1_i32 : i32
    %1 = arith.addi %0, %arg1 : i32
    %c0_i32 = arith.constant 0 : i32
    %c0_i32_0 = arith.constant 0 : i32
    return %1, %c0_i32, %arg2 : i32, i32, i32
  }
  func.func @transform_2(%arg0: i32, %arg1: i32, %arg2: i32) -> (i32, i32, i32) {
    %c0_i32 = arith.constant 0 : i32
    %c0_i32_0 = arith.constant 0 : i32
    %c0_i32_1 = arith.constant 0 : i32
    return %arg0, %c0_i32, %c0_i32_0 : i32, i32, i32
  }
}

</mosaic_0001>

<llo_original>
// kernel: tpu_custom_call.1
$region0: #{tpu_custom_call.1}
  #allocation0 [shape = 'u32[]', space=smem, size = 0x4, offset = 0x4, fixed_abs, tag = 'smem constant byte address 0x4 - core index']
  #allocation1 [shape = 'u32[144,128]{1,0:T(1,128)}', space=vmem, size = 0x12000, scoped, tag = 'internal scratch']
  #allocation2 [shape = 'f32[8,1024]{1,0:T(8,128)}', space=vmem, size = 0x8000, scoped, tag = 'scratch operand']
  %s0 = inlined_call_operand.hbm [shape: f32[2,8,1024], index: 0, kind: input, shape index: {}]
  %s1 = inlined_call_operand.hbm [shape: f32[2,1,1024], index: 1, kind: input, shape index: {}]
  %s2 = inlined_call_operand.vmem [shape: f32[1,8,1], index: 2, kind: output, shape index: {}]
  %s3 = sld [smem:[#allocation0]]
  $region34: #{tpu_custom_call.1} parent=0
    _
  %s5 = ssub.s32 1, %s3
  %s6 = scalar_select 0, %s5, %s3
  $region1: #{tpu_custom_call.1} parent=0
    #allocation3 [shape = 'u8[65536]{0}', space=vmem, size = 0x10000, scoped, tag = 'input window, operand 0, single buffered']
    #allocation4 [shape = 's32[1]{0}', space=sflag, size = 0x4, scoped, tag = 'scoped memory for tpu_custom_call.1']
    #allocation5 [shape = 'u8[8192]{0}', space=vmem, size = 0x2000, scoped, tag = 'input window, operand 1, single buffered']
    #allocation6 [shape = 's32[1]{0}', space=sflag, size = 0x4, scoped, tag = 'scoped memory for tpu_custom_call.1']
    %7 = vsyncpa [#allocation4], 0
    %8 = vsyncpa [#allocation6], 0
    // Predicated region
    $region2: #{tpu_custom_call.1} parent=1 // pred_check
      _
    $region3: #{tpu_custom_call.1} parent=1 // pred_check_branch
      %10 = sbr.rel (0) target = $region5
    $region4: #{tpu_custom_call.1} parent=1 // pred_region
      %s11 = sadd.s32 0, 0
      %s12 = smul.u32 2, %s11
      %s14 = ssub.s32 2048, 2048
      %15 = vsyncadd [#allocation4], %s14
      %s16 = smul.addr %s12, 8
      %s17 = smul.addr %s16, 128
      %s18 = scalar_lea.hbm %s0, %s17
      %s19 = sshll.u32 [#allocation3], 4
      %s20 = int_to_ptr.vmem [resolvable:$true] %s19
      %25 = dma.hbm_to_vmem [thread:$0]  %s18, 2048, %s20, [#allocation4], 1024, 1024, 64
    $region5: #{tpu_custom_call.1} parent=1 // pred_fallthru
      _
    // Predicated region
    $region6: #{tpu_custom_call.1} parent=1 // pred_check
      _
    $region7: #{tpu_custom_call.1} parent=1 // pred_check_branch
      %27 = sbr.rel (0) target = $region9
    $region8: #{tpu_custom_call.1} parent=1 // pred_region
      %s28 = sadd.s32 0, 0
      %s29 = smul.u32 2, %s28
      %s31 = ssub.s32 256, 256
      %32 = vsyncadd [#allocation6], %s31
      %s33 = smul.addr %s29, 8
      %s34 = smul.addr %s33, 16
      %s35 = scalar_lea.hbm %s1, %s34
      %s36 = sshll.u32 [#allocation5], 4
      %s37 = int_to_ptr.vmem [resolvable:$true] %s36
      %42 = dma.hbm_to_vmem [thread:$0]  %s35, 256, %s37, [#allocation6], 128, 128, 8
    $region9: #{tpu_custom_call.1} parent=1 // pred_fallthru
      _
    // Predicated region
    $region10: #{tpu_custom_call.1} parent=1 // pred_check
      _
    $region11: #{tpu_custom_call.1} parent=1 // pred_check_branch
      %44 = sbr.rel (0) target = $region13
    $region12: #{tpu_custom_call.1} parent=1 // pred_region
      %45 = dma.done [#allocation4], 2048
    $region13: #{tpu_custom_call.1} parent=1 // pred_fallthru
      _
    // Predicated region
    $region14: #{tpu_custom_call.1} parent=1 // pred_check
      _
    $region15: #{tpu_custom_call.1} parent=1 // pred_check_branch
      %47 = sbr.rel (0) target = $region17
    $region16: #{tpu_custom_call.1} parent=1 // pred_region
      %48 = dma.done [#allocation6], 256
    $region17: #{tpu_custom_call.1} parent=1 // pred_fallthru
      _
    %s49 = sadd.s32 0, 0
    %s50 = smul.u32 2, %s49
    %s51 = sadd.s32 0, 0
    %s52 = smul.u32 2, %s51
    %p53 = scmp.eq.s32.totalorder 0, 0
    %p54 = scmp.eq.s32.totalorder 0, 0
    %p55 = pnand %p53, %p54
    %p56 = pneg %p55
    // Predicated region
    $region18: #{tpu_custom_call.1} parent=1 // pred_check
      _
    $region19: #{tpu_custom_call.1} parent=1 // pred_check_branch
      %58 = sbr.rel (%p55) target = $region21
    $region20: #{tpu_custom_call.1} parent=1 // pred_region
      %59 = vst [vmem:[#allocation2] sm:$0xff] 0.0
      %60 = vst [vmem:[#allocation2 + $0x8] sm:$0xff] 0.0
      %61 = vst [vmem:[#allocation2 + $0x10] sm:$0xff] 0.0
      %62 = vst [vmem:[#allocation2 + $0x18] sm:$0xff] 0.0
      %63 = vst [vmem:[#allocation2 + $0x20] sm:$0xff] 0.0
      %64 = vst [vmem:[#allocation2 + $0x28] sm:$0xff] 0.0
      %65 = vst [vmem:[#allocation2 + $0x30] sm:$0xff] 0.0
      %66 = vst [vmem:[#allocation2 + $0x38] sm:$0xff] 0.0
    $region21: #{tpu_custom_call.1} parent=1 // pred_fallthru
      _
    %v67 = vld [vmem:[#allocation3] sm:$0xff]
    %v68 = vld [vmem:[#allocation3 + $0x8] sm:$0xff]
    %v69 = vld [vmem:[#allocation3 + $0x10] sm:$0xff]
    %v70 = vld [vmem:[#allocation3 + $0x18] sm:$0xff]
    %v71 = vld [vmem:[#allocation3 + $0x20] sm:$0xff]
    %v72 = vld [vmem:[#allocation3 + $0x28] sm:$0xff]
    %v73 = vld [vmem:[#allocation3 + $0x30] sm:$0xff]
    %v74 = vld [vmem:[#allocation3 + $0x38] sm:$0xff]
    %v75 = vld [vmem:[#allocation3 + $0x40] sm:$0xff]
    %v76 = vld [vmem:[#allocation3 + $0x48] sm:$0xff]
    %v77 = vld [vmem:[#allocation3 + $0x50] sm:$0xff]
    %v78 = vld [vmem:[#allocation3 + $0x58] sm:$0xff]
    %v79 = vld [vmem:[#allocation3 + $0x60] sm:$0xff]
    %v80 = vld [vmem:[#allocation3 + $0x68] sm:$0xff]
    %v81 = vld [vmem:[#allocation3 + $0x70] sm:$0xff]
    %v82 = vld [vmem:[#allocation3 + $0x78] sm:$0xff]
    %v83 = vld [vmem:[#allocation5] sm:$0xff]
    %v84 = vld [vmem:[#allocation5 + $0x8] sm:$0xff]
    %v87 = vlaneseq
    %v88 = vshrl.u32 %v87, 7
    %v89 = vsub.s32 0, %v88
    %v90 = vrot.slane %v83, %v89
    %v91 = vlaneseq
    %v92 = vshrl.u32 %v91, 7
    %v93 = vsub.s32 1, %v92
    %v94 = vrot.slane %v83, %v93
    %v95 = vlaneseq
    %v96 = vshrl.u32 %v95, 7
    %v97 = vsub.s32 2, %v96
    %v98 = vrot.slane %v83, %v97
    %v99 = vlaneseq
    %v100 = vshrl.u32 %v99, 7
    %v101 = vsub.s32 3, %v100
    %v102 = vrot.slane %v83, %v101
    %v103 = vlaneseq
    %v104 = vshrl.u32 %v103, 7
    %v105 = vsub.s32 4, %v104
    %v106 = vrot.slane %v83, %v105
    %v107 = vlaneseq
    %v108 = vshrl.u32 %v107, 7
    %v109 = vsub.s32 5, %v108
    %v110 = vrot.slane %v83, %v109
    %v111 = vlaneseq
    %v112 = vshrl.u32 %v111, 7
    %v113 = vsub.s32 6, %v112
    %v114 = vrot.slane %v83, %v113
    %v115 = vlaneseq
    %v116 = vshrl.u32 %v115, 7
    %v117 = vsub.s32 7, %v116
    %v118 = vrot.slane %v83, %v117
    %v119 = vlaneseq
    %v120 = vshrl.u32 %v119, 7
    %v121 = vsub.s32 0, %v120
    %v122 = vrot.slane %v84, %v121
    %v123 = vlaneseq
    %v124 = vshrl.u32 %v123, 7
    %v125 = vsub.s32 1, %v124
    %v126 = vrot.slane %v84, %v125
    %v127 = vlaneseq
    %v128 = vshrl.u32 %v127, 7
    %v129 = vsub.s32 2, %v128
    %v130 = vrot.slane %v84, %v129
    %v131 = vlaneseq
    %v132 = vshrl.u32 %v131, 7
    %v133 = vsub.s32 3, %v132
    %v134 = vrot.slane %v84, %v133
    %v135 = vlaneseq
    %v136 = vshrl.u32 %v135, 7
    %v137 = vsub.s32 4, %v136
    %v138 = vrot.slane %v84, %v137
    %v139 = vlaneseq
    %v140 = vshrl.u32 %v139, 7
    %v141 = vsub.s32 5, %v140
    %v142 = vrot.slane %v84, %v141
    %v143 = vlaneseq
    %v144 = vshrl.u32 %v143, 7
    %v145 = vsub.s32 6, %v144
    %v146 = vrot.slane %v84, %v145
    %v147 = vlaneseq
    %v148 = vshrl.u32 %v147, 7
    %v149 = vsub.s32 7, %v148
    %v150 = vrot.slane %v84, %v149
    %v167 = vmul.f32 %v67, %v90
    %v168 = vmul.f32 %v68, %v94
    %v169 = vmul.f32 %v69, %v98
    %v170 = vmul.f32 %v70, %v102
    %v171 = vmul.f32 %v71, %v106
    %v172 = vmul.f32 %v72, %v110
    %v173 = vmul.f32 %v73, %v114
    %v174 = vmul.f32 %v74, %v118
    %v175 = vmul.f32 %v75, %v122
    %v176 = vmul.f32 %v76, %v126
    %v177 = vmul.f32 %v77, %v130
    %v178 = vmul.f32 %v78, %v134
    %v179 = vmul.f32 %v79, %v138
    %v180 = vmul.f32 %v80, %v142
    %v181 = vmul.f32 %v81, %v146
    %v182 = vmul.f32 %v82, %v150
    %v183 = vld [vmem:[#allocation2] sm:$0xff]
    %v184 = vld [vmem:[#allocation2 + $0x8] sm:$0xff]
    %v185 = vld [vmem:[#allocation2 + $0x10] sm:$0xff]
    %v186 = vld [vmem:[#allocation2 + $0x18] sm:$0xff]
    %v187 = vld [vmem:[#allocation2 + $0x20] sm:$0xff]
    %v188 = vld [vmem:[#allocation2 + $0x28] sm:$0xff]
    %v189 = vld [vmem:[#allocation2 + $0x30] sm:$0xff]
    %v190 = vld [vmem:[#allocation2 + $0x38] sm:$0xff]
    %v191 = vadd.f32 %v167, %v175
    %v192 = vadd.f32 %v168, %v176
    %v193 = vadd.f32 %v169, %v177
    %v194 = vadd.f32 %v170, %v178
    %v195 = vadd.f32 %v171, %v179
    %v196 = vadd.f32 %v172, %v180
    %v197 = vadd.f32 %v173, %v181
    %v198 = vadd.f32 %v174, %v182
    %v199 = vadd.f32 %v183, %v191
    %v200 = vadd.f32 %v184, %v192
    %v201 = vadd.f32 %v185, %v193
    %v202 = vadd.f32 %v186, %v194
    %v203 = vadd.f32 %v187, %v195
    %v204 = vadd.f32 %v188, %v196
    %v205 = vadd.f32 %v189, %v197
    %v206 = vadd.f32 %v190, %v198
    %207 = vst [vmem:[#allocation2] sm:$0xff] %v199
    %208 = vst [vmem:[#allocation2 + $0x8] sm:$0xff] %v200
    %209 = vst [vmem:[#allocation2 + $0x10] sm:$0xff] %v201
    %210 = vst [vmem:[#allocation2 + $0x18] sm:$0xff] %v202
    %211 = vst [vmem:[#allocation2 + $0x20] sm:$0xff] %v203
    %212 = vst [vmem:[#allocation2 + $0x28] sm:$0xff] %v204
    %213 = vst [vmem:[#allocation2 + $0x30] sm:$0xff] %v205
    %214 = vst [vmem:[#allocation2 + $0x38] sm:$0xff] %v206
    // Predicated region
    $region22: #{tpu_custom_call.1} parent=1 // pred_check
      _
    $region23: #{tpu_custom_call.1} parent=1 // pred_check_branch
      %216 = sbr.rel (%p55) target = $region25
    $region24: #{tpu_custom_call.1} parent=1 // pred_region
      %v217 = vld [vmem:[#allocation2] sm:$0xff]
      %v218 = vld [vmem:[#allocation2 + $0x8] sm:$0xff]
      %v219 = vld [vmem:[#allocation2 + $0x10] sm:$0xff]
      %v220 = vld [vmem:[#allocation2 + $0x18] sm:$0xff]
      %v221 = vld [vmem:[#allocation2 + $0x20] sm:$0xff]
      %v222 = vld [vmem:[#allocation2 + $0x28] sm:$0xff]
      %v223 = vld [vmem:[#allocation2 + $0x30] sm:$0xff]
      %v224 = vld [vmem:[#allocation2 + $0x38] sm:$0xff]
      %v225 = vadd.f32 %v217, %v218
      %v226 = vadd.f32 %v225, %v219
      %v227 = vadd.f32 %v226, %v220
      %v228 = vadd.f32 %v227, %v221
      %v229 = vadd.f32 %v228, %v222
      %v230 = vadd.f32 %v229, %v223
      %v231 = vadd.f32 %v230, %v224
      %232 = vadd.xlane.f32.xlu0 %v231
      %v233 = vpop.xlane.xlu0 %232
      %vm234 = vcmask 7168
      %235 = vst.msk [vmem:[%s2] sm:$0xff] %vm234, %v233
    $region25: #{tpu_custom_call.1} parent=1 // pred_fallthru
      _
    // Predicated region
    $region26: #{tpu_custom_call.1} parent=1 // pred_check
      _
    $region27: #{tpu_custom_call.1} parent=1 // pred_check_branch
      %237 = sbr.rel (0) target = $region29
    $region28: #{tpu_custom_call.1} parent=1 // pred_region
      _
    $region29: #{tpu_custom_call.1} parent=1 // pred_fallthru
      _
    // Predicated region
    $region30: #{tpu_custom_call.1} parent=1 // pred_check
      _
    $region31: #{tpu_custom_call.1} parent=1 // pred_check_branch
      %239 = sbr.rel (0) target = $region33
    $region32: #{tpu_custom_call.1} parent=1 // pred_region
      _
    $region33: #{tpu_custom_call.1} parent=1 // pred_fallthru
      _
    %240 = vsyncpa [#allocation4], 1
    %241 = vsyncpa [#allocation6], 1

</llo_original>
